<compile_context>
chip_gen: v6e
topology: v6e:2x2x1
jax: 0.10.0
libtpu: 0.0.40
codegen_flags: <defaults>
</compile_context>

<pallas_src>
import functools

import jax
import jax.numpy as jnp
from jax.experimental import pallas as pl
from jax.experimental.pallas import tpu as pltpu

LANE = 128      # lane width (last dim granule)
SUBLANE = 8     # f32 sublane granule (second-to-last dim)


def _round_up(n: int, m: int) -> int:
    return ((n + m - 1) // m) * m


# ----------------------------------------------------------------------------
# Pallas kernel: entire sparse-MLP chain fused into one kernel invocation.
# refs = (x_ref, w0_ref, ..., w{n-1}_ref, bias_ref, o_ref)
# ----------------------------------------------------------------------------
def _fused_sparse_mlp_kernel(*refs, n_layers: int, bias_slices):
    x_ref = refs[0]
    w_refs = refs[1:1 + n_layers]
    bias_ref = refs[1 + n_layers]                      # [B_pad, sum(Fo_pad)] f32
    o_ref = refs[2 + n_layers]

    h = x_ref[...]                                     # [B_pad, F0_pad] bf16
    for i in range(n_layers):                          # static Python unroll
        w_ref = w_refs[i]                              # [Fi_pad, Fo_pad] bf16 (mask pre-folded)
        lhs = h if i == 0 else h.astype(w_ref.dtype)   # only post-layer-0 h needs a cast
        y = jnp.dot(lhs, w_ref[...],
                    preferred_element_type=jnp.float32)        # MXU, f32 accumulation
        off, width = bias_slices[i]                    # static, lane-aligned slice
        y = y + bias_ref[:, off:off + width]           # plain VPU add (bias pre-replicated)
        if i < n_layers - 1:                           # ReLU between layers, not after last
            y = jnp.maximum(y, 0.0)
        h = y
    o_ref[...] = h                                     # full-vreg [B_pad, Fo_pad] f32 store


def fused_sparse_mlp(x_pad, weights, bias_concat, bias_slices):
    """Run the whole layer chain in one pallas_call.

    x_pad:       [B_pad, F0_pad] bf16
    weights:     list of [Fi_pad, Fo_pad] bf16 (mask folded, zero padded)
    bias_concat: [B_pad, sum(Fo_pad)] f32 (per-layer biases, sublane-replicated)
    """
    n_layers = len(weights)
    b_pad = x_pad.shape[0]
    f_out_pad = weights[-1].shape[1]

    flat_args = [x_pad, *weights, bias_concat]
    vmem = pl.BlockSpec(memory_space=pltpu.MemorySpace.VMEM)
    kernel = functools.partial(_fused_sparse_mlp_kernel,
                               n_layers=n_layers, bias_slices=bias_slices)
    return pl.pallas_call(
        kernel,
        out_shape=jax.ShapeDtypeStruct((b_pad, f_out_pad), jnp.float32),
        in_specs=[vmem] * len(flat_args),
        out_specs=vmem,
    )(*flat_args)


# ----------------------------------------------------------------------------
# Deterministic parameter construction (mirrors StandardSparseLayer.__init__)
# ----------------------------------------------------------------------------
def init_params(architecture, sparsity, key):
    """Returns list of (W_t [in,out] f32, mask_t [in,out] f32, b [out] f32)."""
    params = []
    for i in range(len(architecture) - 1):
        f_in, f_out = architecture[i], architecture[i + 1]
        key, kw, kb, km = jax.random.split(key, 4)
        bound = float(f_in) ** -0.5
        # torch nn.Linear default init U(-1/sqrt(in), 1/sqrt(in)); weight stored
        # transposed here as [in, out] so the kernel does x @ W.
        w_t = jax.random.uniform(kw, (f_in, f_out), jnp.float32, -bound, bound)
        b = jax.random.uniform(kb, (f_out,), jnp.float32, -bound, bound)
        # Binary mask keeping a fraction `sparsity` of connections active.
        mask_t = (jax.random.uniform(km, (f_in, f_out), jnp.float32) < sparsity)
        params.append((w_t, mask_t.astype(jnp.float32), b))
    return params


def prepare_params(raw_params, batch_pad, lane=LANE):
    """Fold mask into weights, pad to 128 lanes, cast W->bf16, and pack biases.

    Returns (weights_bf16, bias_concat, bias_slices):
      weights_bf16: list of [Fi_pad, Fo_pad] bf16
      bias_concat:  [batch_pad, sum(Fo_pad)] f32 (each bias replicated on sublanes)
      bias_slices:  tuple of (lane_offset, Fo_pad) per layer (static)

    Padded weight rows/cols and bias lanes are zero, so padded activation lanes
    stay exactly zero through every layer (0 @ W = 0, +0 bias, ReLU(0) = 0).
    """
    weights, bias_cols, bias_slices = [], [], []
    off = 0
    for (w_t, mask_t, b) in raw_params:
        f_in, f_out = w_t.shape
        fi_p, fo_p = _round_up(f_in, lane), _round_up(f_out, lane)
        w = w_t * mask_t                                  # fold mask once, at init
        w_p = jnp.zeros((fi_p, fo_p), jnp.float32).at[:f_in, :f_out].set(w)
        weights.append(w_p.astype(jnp.bfloat16))
        b_p = jnp.zeros((fo_p,), jnp.float32).at[:f_out].set(b)
        bias_cols.append(jnp.broadcast_to(b_p[None, :], (batch_pad, fo_p)))
        bias_slices.append((off, fo_p))
        off += fo_p
    bias_concat = jnp.concatenate(bias_cols, axis=1)      # [batch_pad, sum(Fo_pad)] f32
    return weights, bias_concat, tuple(bias_slices)


# ----------------------------------------------------------------------------
# Forward pass (flatten + pad + bf16 cast in the wrapper, one Pallas call, slice)
# ----------------------------------------------------------------------------
def modern_multi_scale_forward(x, weights, bias_concat, bias_slices, out_features):
    if x.ndim > 2:
        x = x.reshape(x.shape[0], -1)
    batch, f_in = x.shape
    b_pad = bias_concat.shape[0]                          # padded batch (multiple of 8)
    f_in_pad = weights[0].shape[0]
    assert batch <= b_pad
    x = jnp.pad(x, ((0, b_pad - batch), (0, f_in_pad - f_in)))
    x = x.astype(jnp.bfloat16)                            # cast once in the wrapper
    y_pad = fused_sparse_mlp(x, weights, bias_concat, bias_slices)
    return y_pad[:batch, :out_features]


# Pure-JAX reference mirroring the kernel's precision path (bf16 operands,
# f32 accumulation) for a tight correctness check.
def _reference_forward(x, weights, bias_concat, bias_slices, out_features):
    if x.ndim > 2:
        x = x.reshape(x.shape[0], -1)
    batch, f_in = x.shape
    b_pad = bias_concat.shape[0]
    f_in_pad = weights[0].shape[0]
    h = jnp.pad(x, ((0, b_pad - batch), (0, f_in_pad - f_in))).astype(jnp.bfloat16)
    n = len(weights)
    for i, w in enumerate(weights):
        off, width = bias_slices[i]
        y = jnp.dot(h if i == 0 else h.astype(w.dtype), w,
                    preferred_element_type=jnp.float32)
        y = y + bias_concat[:, off:off + width]
        if i < n - 1:
            y = jnp.maximum(y, 0.0)
        h = y
    return h[:batch, :out_features]


if __name__ == "__main__":
    key = jax.random.PRNGKey(0)
    k_x, k_p = jax.random.split(key)

    # Small, module-consistent shapes: image-like input flattened by forward().
    batch, channels, spatial = 2, 4, 16
    x = jax.random.normal(k_x, (batch, channels, spatial, spatial), jnp.float32)

    # initial_architecture / initial_sparsity (deterministic, in-script)
    architecture = [channels * spatial * spatial, 64, 32, 10]  # [1024, 64, 32, 10]
    sparsity = 0.1

    batch_pad = _round_up(batch, SUBLANE)                 # 2 -> 8 (full-sublane vregs)
    raw_params = init_params(architecture, sparsity, k_p)
    weights, bias_concat, bias_slices = prepare_params(raw_params, batch_pad)

    out = modern_multi_scale_forward(x, weights, bias_concat, bias_slices,
                                     architecture[-1])
    out = jax.block_until_ready(out)

    ref = _reference_forward(x, weights, bias_concat, bias_slices, architecture[-1])
    assert out.shape == (batch, architecture[-1])
    assert jnp.allclose(out, ref, atol=1e-3, rtol=1e-3)

    print("KERNEL_OK")
</pallas_src>

<mosaic_0001>
module attributes {stable_mosaic.version = 11 : i64} {
  func.func @_fused_sparse_mlp_kernel(%arg0: memref<8x1024xbf16, #tpu.memory_space<vmem>>, %arg1: memref<1024x128xbf16, #tpu.memory_space<vmem>>, %arg2: memref<128x128xbf16, #tpu.memory_space<vmem>>, %arg3: memref<128x128xbf16, #tpu.memory_space<vmem>>, %arg4: memref<8x384xf32, #tpu.memory_space<vmem>>, %arg5: memref<8x128xf32, #tpu.memory_space<vmem>>) attributes {dimension_semantics = [], scalar_prefetch = 0 : i64, scratch_operands = 0 : i64, tpu.core_type = #tpu.core_type<tc>} {
    %c0 = arith.constant 0 : index
    %c0_0 = arith.constant 0 : index
    %0 = vector.load %arg0[%c0, %c0_0] : memref<8x1024xbf16, #tpu.memory_space<vmem>>, vector<8x1024xbf16>
    %c0_1 = arith.constant 0 : index
    %c0_2 = arith.constant 0 : index
    %1 = vector.load %arg1[%c0_1, %c0_2] : memref<1024x128xbf16, #tpu.memory_space<vmem>>, vector<1024x128xbf16>
    %cst = arith.constant dense<0.000000e+00> : vector<8x128xf32>
    %2 = tpu.matmul %0, %1, %cst {dimension_numbers = #tpu.dot_dimension_numbers<[1], [0], [0], [1], [0, 0, 1, 1], [], []>} : vector<8x1024xbf16>, vector<1024x128xbf16>, vector<8x128xf32> -> vector<8x128xf32>
    %c0_3 = arith.constant 0 : index
    %c0_4 = arith.constant 0 : index
    %3 = vector.load %arg4[%c0_3, %c0_4] : memref<8x384xf32, #tpu.memory_space<vmem>>, vector<8x128xf32>
    %4 = arith.addf %2, %3 : vector<8x128xf32>
    %cst_5 = arith.constant 0.000000e+00 : f32
    %5 = vector.broadcast %cst_5 : f32 to vector<8x128xf32>
    %6 = arith.maximumf %4, %5 : vector<8x128xf32>
    %7 = arith.truncf %6 : vector<8x128xf32> to vector<8x128xbf16>
    %c0_6 = arith.constant 0 : index
    %c0_7 = arith.constant 0 : index
    %8 = vector.load %arg2[%c0_6, %c0_7] : memref<128x128xbf16, #tpu.memory_space<vmem>>, vector<128x128xbf16>
    %cst_8 = arith.constant dense<0.000000e+00> : vector<8x128xf32>
    %9 = tpu.matmul %7, %8, %cst_8 {dimension_numbers = #tpu.dot_dimension_numbers<[1], [0], [0], [1], [0, 0, 1, 1], [], []>} : vector<8x128xbf16>, vector<128x128xbf16>, vector<8x128xf32> -> vector<8x128xf32>
    %c0_9 = arith.constant 0 : index
    %c128 = arith.constant 128 : index
    %10 = vector.load %arg4[%c0_9, %c128] : memref<8x384xf32, #tpu.memory_space<vmem>>, vector<8x128xf32>
    %11 = arith.addf %9, %10 : vector<8x128xf32>
    %cst_10 = arith.constant 0.000000e+00 : f32
    %12 = vector.broadcast %cst_10 : f32 to vector<8x128xf32>
    %13 = arith.maximumf %11, %12 : vector<8x128xf32>
    %14 = arith.truncf %13 : vector<8x128xf32> to vector<8x128xbf16>
    %c0_11 = arith.constant 0 : index
    %c0_12 = arith.constant 0 : index
    %15 = vector.load %arg3[%c0_11, %c0_12] : memref<128x128xbf16, #tpu.memory_space<vmem>>, vector<128x128xbf16>
    %cst_13 = arith.constant dense<0.000000e+00> : vector<8x128xf32>
    %16 = tpu.matmul %14, %15, %cst_13 {dimension_numbers = #tpu.dot_dimension_numbers<[1], [0], [0], [1], [0, 0, 1, 1], [], []>} : vector<8x128xbf16>, vector<128x128xbf16>, vector<8x128xf32> -> vector<8x128xf32>
    %c0_14 = arith.constant 0 : index
    %c256 = arith.constant 256 : index
    %17 = vector.load %arg4[%c0_14, %c256] : memref<8x384xf32, #tpu.memory_space<vmem>>, vector<8x128xf32>
    %18 = arith.addf %16, %17 : vector<8x128xf32>
    %c0_15 = arith.constant 0 : index
    %c0_16 = arith.constant 0 : index
    %19 = vector.load %arg5[%c0_15, %c0_16] : memref<8x128xf32, #tpu.memory_space<vmem>>, vector<8x128xf32>
    tpu.vector_store %arg5[%c0_15, %c0_16], %18 {strides = array<i32>} : memref<8x128xf32, #tpu.memory_space<vmem>>, vector<8x128xf32>,
    return
  }
}

</mosaic_0001>

<llo_original>
// kernel: tpu_custom_call.1
$region0: #{tpu_custom_call.1}
  #allocation0 [shape = 'u32[]', space=smem, size = 0x4, offset = 0x4, fixed_abs, tag = 'smem constant byte address 0x4 - core index']
  #allocation1 [shape = 'u32[144,128]{1,0:T(1,128)}', space=vmem, size = 0x12000, scoped, tag = 'internal scratch']
  %s0 = inlined_call_operand.hbm [shape: bf16[8,1024], index: 0, kind: input, shape index: {}]
  %s1 = inlined_call_operand.hbm [shape: bf16[1024,128], index: 1, kind: input, shape index: {}]
  %s2 = inlined_call_operand.hbm [shape: bf16[128,128], index: 2, kind: input, shape index: {}]
  %s3 = inlined_call_operand.hbm [shape: bf16[128,128], index: 3, kind: input, shape index: {}]
  %s4 = inlined_call_operand.hbm [shape: f32[8,384], index: 4, kind: input, shape index: {}]
  %s5 = inlined_call_operand.hbm [shape: f32[8,128], index: 5, kind: output, shape index: {}]
  %s6 = sld [smem:[#allocation0]]
  $region50: #{tpu_custom_call.1} parent=0
    _
  %s8 = ssub.s32 1, %s6
  %s9 = scalar_select 0, %s8, %s6
  $region1: #{tpu_custom_call.1} parent=0
    #allocation2 [shape = 'u8[16384]{0}', space=vmem, size = 0x4000, scoped, tag = 'input window, operand 0, single buffered']
    #allocation3 [shape = 's32[1]{0}', space=sflag, size = 0x4, scoped, tag = 'scoped memory for tpu_custom_call.1']
    #allocation4 [shape = 's32[1]{0}', space=sflag, size = 0x4, scoped, tag = 'scoped memory for tpu_custom_call.1']
    #allocation5 [shape = 'u8[262144]{0}', space=vmem, size = 0x40000, scoped, tag = 'input window, operand 1, single buffered']
    #allocation6 [shape = 's32[1]{0}', space=sflag, size = 0x4, scoped, tag = 'scoped memory for tpu_custom_call.1']
    #allocation7 [shape = 'u8[32768]{0}', space=vmem, size = 0x8000, scoped, tag = 'input window, operand 2, single buffered']
    #allocation8 [shape = 'u8[32768]{0}', space=vmem, size = 0x8000, scoped, tag = 'input window, operand 3, single buffered']
    #allocation9 [shape = 's32[1]{0}', space=sflag, size = 0x4, scoped, tag = 'scoped memory for tpu_custom_call.1']
    #allocation10 [shape = 'u8[12288]{0}', space=vmem, size = 0x3000, scoped, tag = 'input window, operand 4, single buffered']
    #allocation11 [shape = 'u8[4096]{0}', space=vmem, size = 0x1000, scoped, tag = 'output window, operand 0, single buffered']
    %10 = vsyncpa [#allocation3], 0
    %11 = vsyncpa [#allocation6], 0
    %12 = vsyncpa [#allocation9], 0
    %13 = vsyncpa [#allocation4], 0
    // Predicated region
    $region2: #{tpu_custom_call.1} parent=1 // pred_check
      _
    $region3: #{tpu_custom_call.1} parent=1 // pred_check_branch
      %15 = sbr.rel (0) target = $region5
    $region4: #{tpu_custom_call.1} parent=1 // pred_region
      %s17 = ssub.s32 512, 512
      %18 = vsyncadd [#allocation3], %s17
      %s20 = sshll.u32 [#allocation2], 4
      %s21 = int_to_ptr.vmem [resolvable:$true] %s20
      %23 = dma.hbm_to_vmem [thread:$0]  %s0, 512, %s21, [#allocation3]
    $region5: #{tpu_custom_call.1} parent=1 // pred_fallthru
      _
    // Predicated region
    $region6: #{tpu_custom_call.1} parent=1 // pred_check
      _
    $region7: #{tpu_custom_call.1} parent=1 // pred_check_branch
      %25 = sbr.rel (0) target = $region9
    $region8: #{tpu_custom_call.1} parent=1 // pred_region
      %s27 = ssub.s32 8192, 8192
      %28 = vsyncadd [#allocation6], %s27
      %s29 = sshll.u32 [#allocation5], 4
      %s30 = int_to_ptr.vmem [resolvable:$true] %s29
      %35 = dma.hbm_to_vmem [thread:$0]  %s1, 8192, %s30, [#allocation6], 64, 64, 4
    $region9: #{tpu_custom_call.1} parent=1 // pred_fallthru
      _
    // Predicated region
    $region10: #{tpu_custom_call.1} parent=1 // pred_check
      _
    $region11: #{tpu_custom_call.1} parent=1 // pred_check_branch
      %37 = sbr.rel (0) target = $region13
    $region12: #{tpu_custom_call.1} parent=1 // pred_region
      %s39 = ssub.s32 1024, 1024
      %40 = vsyncadd [#allocation6], %s39
      %s41 = sshll.u32 [#allocation7], 4
      %s42 = int_to_ptr.vmem [resolvable:$true] %s41
      %47 = dma.hbm_to_vmem [thread:$0]  %s2, 1024, %s42, [#allocation6], 64, 64, 4
    $region13: #{tpu_custom_call.1} parent=1 // pred_fallthru
      _
    // Predicated region
    $region14: #{tpu_custom_call.1} parent=1 // pred_check
      _
    $region15: #{tpu_custom_call.1} parent=1 // pred_check_branch
      %49 = sbr.rel (0) target = $region17
    $region16: #{tpu_custom_call.1} parent=1 // pred_region
      %s51 = ssub.s32 1024, 1024
      %52 = vsyncadd [#allocation9], %s51
      %s53 = sshll.u32 [#allocation8], 4
      %s54 = int_to_ptr.vmem [resolvable:$true] %s53
      %59 = dma.hbm_to_vmem [thread:$0]  %s3, 1024, %s54, [#allocation9], 64, 64, 4
    $region17: #{tpu_custom_call.1} parent=1 // pred_fallthru
      _
    // Predicated region
    $region18: #{tpu_custom_call.1} parent=1 // pred_check
      _
    $region19: #{tpu_custom_call.1} parent=1 // pred_check_branch
      %61 = sbr.rel (0) target = $region21
    $region20: #{tpu_custom_call.1} parent=1 // pred_region
      %s63 = ssub.s32 384, 384
      %64 = vsyncadd [#allocation9], %s63
      %s66 = sshll.u32 [#allocation10], 4
      %s67 = int_to_ptr.vmem [resolvable:$true] %s66
      %69 = dma.hbm_to_vmem [thread:$0]  %s4, 384, %s67, [#allocation9]
    $region21: #{tpu_custom_call.1} parent=1 // pred_fallthru
      _
    // Predicated region
    $region22: #{tpu_custom_call.1} parent=1 // pred_check
      _
    $region23: #{tpu_custom_call.1} parent=1 // pred_check_branch
      %71 = sbr.rel (0) target = $region25
    $region24: #{tpu_custom_call.1} parent=1 // pred_region
      %72 = dma.done [#allocation3], 512
    $region25: #{tpu_custom_call.1} parent=1 // pred_fallthru
      _
    // Predicated region
    $region26: #{tpu_custom_call.1} parent=1 // pred_check
      _
    $region27: #{tpu_custom_call.1} parent=1 // pred_check_branch
      %74 = sbr.rel (0) target = $region29
    $region28: #{tpu_custom_call.1} parent=1 // pred_region
      %75 = dma.done [#allocation6], 8192
    $region29: #{tpu_custom_call.1} parent=1 // pred_fallthru
      _
    // Predicated region
    $region30: #{tpu_custom_call.1} parent=1 // pred_check
      _
    $region31: #{tpu_custom_call.1} parent=1 // pred_check_branch
      %77 = sbr.rel (0) target = $region33
    $region32: #{tpu_custom_call.1} parent=1 // pred_region
      %78 = dma.done [#allocation6], 1024
    $region33: #{tpu_custom_call.1} parent=1 // pred_fallthru
      _
    // Predicated region
    $region34: #{tpu_custom_call.1} parent=1 // pred_check
      _
    $region35: #{tpu_custom_call.1} parent=1 // pred_check_branch
      %80 = sbr.rel (0) target = $region37
    $region36: #{tpu_custom_call.1} parent=1 // pred_region
      %81 = dma.done [#allocation9], 1024
    $region37: #{tpu_custom_call.1} parent=1 // pred_fallthru
      _
    // Predicated region
    $region38: #{tpu_custom_call.1} parent=1 // pred_check
      _
    $region39: #{tpu_custom_call.1} parent=1 // pred_check_branch
      %83 = sbr.rel (0) target = $region41
    $region40: #{tpu_custom_call.1} parent=1 // pred_region
      %84 = dma.done [#allocation9], 384
    $region41: #{tpu_custom_call.1} parent=1 // pred_fallthru
      _
    %v86 = vld [vmem:[#allocation2] sm:$0xff]
    %v87 = vld [vmem:[#allocation2 + $0x8] sm:$0xff]
    %v88 = vld [vmem:[#allocation2 + $0x10] sm:$0xff]
    %v89 = vld [vmem:[#allocation2 + $0x18] sm:$0xff]
    %v90 = vld [vmem:[#allocation5] sm:$0xf]
    %v91 = vld [vmem:[#allocation5 + $0x4] sm:$0xf]
    %v92 = vld [vmem:[#allocation5 + $0x8] sm:$0xf]
    %v93 = vld [vmem:[#allocation5 + $0xc] sm:$0xf]
    %v94 = vld [vmem:[#allocation5 + $0x10] sm:$0xf]
    %v95 = vld [vmem:[#allocation5 + $0x14] sm:$0xf]
    %v96 = vld [vmem:[#allocation5 + $0x18] sm:$0xf]
    %v97 = vld [vmem:[#allocation5 + $0x1c] sm:$0xf]
    %v98 = vld [vmem:[#allocation5 + $0x20] sm:$0xf]
    %v99 = vld [vmem:[#allocation5 + $0x24] sm:$0xf]
    %v100 = vld [vmem:[#allocation5 + $0x28] sm:$0xf]
    %v101 = vld [vmem:[#allocation5 + $0x2c] sm:$0xf]
    %v102 = vld [vmem:[#allocation5 + $0x30] sm:$0xf]
    %v103 = vld [vmem:[#allocation5 + $0x34] sm:$0xf]
    %v104 = vld [vmem:[#allocation5 + $0x38] sm:$0xf]
    %v105 = vld [vmem:[#allocation5 + $0x3c] sm:$0xf]
    %v106 = vld [vmem:[#allocation5 + $0x40] sm:$0xf]
    %v107 = vld [vmem:[#allocation5 + $0x44] sm:$0xf]
    %v108 = vld [vmem:[#allocation5 + $0x48] sm:$0xf]
    %v109 = vld [vmem:[#allocation5 + $0x4c] sm:$0xf]
    %v110 = vld [vmem:[#allocation5 + $0x50] sm:$0xf]
    %v111 = vld [vmem:[#allocation5 + $0x54] sm:$0xf]
    %v112 = vld [vmem:[#allocation5 + $0x58] sm:$0xf]
    %v113 = vld [vmem:[#allocation5 + $0x5c] sm:$0xf]
    %v114 = vld [vmem:[#allocation5 + $0x60] sm:$0xf]
    %v115 = vld [vmem:[#allocation5 + $0x64] sm:$0xf]
    %v116 = vld [vmem:[#allocation5 + $0x68] sm:$0xf]
    %v117 = vld [vmem:[#allocation5 + $0x6c] sm:$0xf]
    %v118 = vld [vmem:[#allocation5 + $0x70] sm:$0xf]
    %v119 = vld [vmem:[#allocation5 + $0x74] sm:$0xf]
    %v120 = vld [vmem:[#allocation5 + $0x78] sm:$0xf]
    %v121 = vld [vmem:[#allocation5 + $0x7c] sm:$0xf]
    %v122 = vld [vmem:[#allocation5 + $0x80] sm:$0xf]
    %v123 = vld [vmem:[#allocation5 + $0x84] sm:$0xf]
    %v124 = vld [vmem:[#allocation5 + $0x88] sm:$0xf]
    %v125 = vld [vmem:[#allocation5 + $0x8c] sm:$0xf]
    %v126 = vld [vmem:[#allocation5 + $0x90] sm:$0xf]
    %v127 = vld [vmem:[#allocation5 + $0x94] sm:$0xf]
    %v128 = vld [vmem:[#allocation5 + $0x98] sm:$0xf]
    %v129 = vld [vmem:[#allocation5 + $0x9c] sm:$0xf]
    %v130 = vld [vmem:[#allocation5 + $0xa0] sm:$0xf]
    %v131 = vld [vmem:[#allocation5 + $0xa4] sm:$0xf]
    %v132 = vld [vmem:[#allocation5 + $0xa8] sm:$0xf]
    %v133 = vld [vmem:[#allocation5 + $0xac] sm:$0xf]
    %v134 = vld [vmem:[#allocation5 + $0xb0] sm:$0xf]
    %v135 = vld [vmem:[#allocation5 + $0xb4] sm:$0xf]
    %v136 = vld [vmem:[#allocation5 + $0xb8] sm:$0xf]
    %v137 = vld [vmem:[#allocation5 + $0xbc] sm:$0xf]
    %v138 = vld [vmem:[#allocation5 + $0xc0] sm:$0xf]
    %v139 = vld [vmem:[#allocation5 + $0xc4] sm:$0xf]
    %v140 = vld [vmem:[#allocation5 + $0xc8] sm:$0xf]
    %v141 = vld [vmem:[#allocation5 + $0xcc] sm:$0xf]
    %v142 = vld [vmem:[#allocation5 + $0xd0] sm:$0xf]
    %v143 = vld [vmem:[#allocation5 + $0xd4] sm:$0xf]
    %v144 = vld [vmem:[#allocation5 + $0xd8] sm:$0xf]
    %v145 = vld [vmem:[#allocation5 + $0xdc] sm:$0xf]
    %v146 = vld [vmem:[#allocation5 + $0xe0] sm:$0xf]
    %v147 = vld [vmem:[#allocation5 + $0xe4] sm:$0xf]
    %v148 = vld [vmem:[#allocation5 + $0xe8] sm:$0xf]
    %v149 = vld [vmem:[#allocation5 + $0xec] sm:$0xf]
    %v150 = vld [vmem:[#allocation5 + $0xf0] sm:$0xf]
    %v151 = vld [vmem:[#allocation5 + $0xf4] sm:$0xf]
    %v152 = vld [vmem:[#allocation5 + $0xf8] sm:$0xf]
    %v153 = vld [vmem:[#allocation5 + $0xfc] sm:$0xf]
    %v154 = vld [vmem:[#allocation5 + $0x100] sm:$0xf]
    %v155 = vld [vmem:[#allocation5 + $0x104] sm:$0xf]
    %v156 = vld [vmem:[#allocation5 + $0x108] sm:$0xf]
    %v157 = vld [vmem:[#allocation5 + $0x10c] sm:$0xf]
    %v158 = vld [vmem:[#allocation5 + $0x110] sm:$0xf]
    %v159 = vld [vmem:[#allocation5 + $0x114] sm:$0xf]
    %v160 = vld [vmem:[#allocation5 + $0x118] sm:$0xf]
    %v161 = vld [vmem:[#allocation5 + $0x11c] sm:$0xf]
    %v162 = vld [vmem:[#allocation5 + $0x120] sm:$0xf]
    %v163 = vld [vmem:[#allocation5 + $0x124] sm:$0xf]
    %v164 = vld [vmem:[#allocation5 + $0x128] sm:$0xf]
    %v165 = vld [vmem:[#allocation5 + $0x12c] sm:$0xf]
    %v166 = vld [vmem:[#allocation5 + $0x130] sm:$0xf]
    %v167 = vld [vmem:[#allocation5 + $0x134] sm:$0xf]
    %v168 = vld [vmem:[#allocation5 + $0x138] sm:$0xf]
    %v169 = vld [vmem:[#allocation5 + $0x13c] sm:$0xf]
    %v170 = vld [vmem:[#allocation5 + $0x140] sm:$0xf]
    %v171 = vld [vmem:[#allocation5 + $0x144] sm:$0xf]
    %v172 = vld [vmem:[#allocation5 + $0x148] sm:$0xf]
    %v173 = vld [vmem:[#allocation5 + $0x14c] sm:$0xf]
    %v174 = vld [vmem:[#allocation5 + $0x150] sm:$0xf]
    %v175 = vld [vmem:[#allocation5 + $0x154] sm:$0xf]
    %v176 = vld [vmem:[#allocation5 + $0x158] sm:$0xf]
    %v177 = vld [vmem:[#allocation5 + $0x15c] sm:$0xf]
    %v178 = vld [vmem:[#allocation5 + $0x160] sm:$0xf]
    %v179 = vld [vmem:[#allocation5 + $0x164] sm:$0xf]
    %v180 = vld [vmem:[#allocation5 + $0x168] sm:$0xf]
    %v181 = vld [vmem:[#allocation5 + $0x16c] sm:$0xf]
    %v182 = vld [vmem:[#allocation5 + $0x170] sm:$0xf]
    %v183 = vld [vmem:[#allocation5 + $0x174] sm:$0xf]
    %v184 = vld [vmem:[#allocation5 + $0x178] sm:$0xf]
    %v185 = vld [vmem:[#allocation5 + $0x17c] sm:$0xf]
    %v186 = vld [vmem:[#allocation5 + $0x180] sm:$0xf]
    %v187 = vld [vmem:[#allocation5 + $0x184] sm:$0xf]
    %v188 = vld [vmem:[#allocation5 + $0x188] sm:$0xf]
    %v189 = vld [vmem:[#allocation5 + $0x18c] sm:$0xf]
    %v190 = vld [vmem:[#allocation5 + $0x190] sm:$0xf]
    %v191 = vld [vmem:[#allocation5 + $0x194] sm:$0xf]
    %v192 = vld [vmem:[#allocation5 + $0x198] sm:$0xf]
    %v193 = vld [vmem:[#allocation5 + $0x19c] sm:$0xf]
    %v194 = vld [vmem:[#allocation5 + $0x1a0] sm:$0xf]
    %v195 = vld [vmem:[#allocation5 + $0x1a4] sm:$0xf]
    %v196 = vld [vmem:[#allocation5 + $0x1a8] sm:$0xf]
    %v197 = vld [vmem:[#allocation5 + $0x1ac] sm:$0xf]
    %v198 = vld [vmem:[#allocation5 + $0x1b0] sm:$0xf]
    %v199 = vld [vmem:[#allocation5 + $0x1b4] sm:$0xf]
    %v200 = vld [vmem:[#allocation5 + $0x1b8] sm:$0xf]
    %v201 = vld [vmem:[#allocation5 + $0x1bc] sm:$0xf]
    %v202 = vld [vmem:[#allocation5 + $0x1c0] sm:$0xf]
    %v203 = vld [vmem:[#allocation5 + $0x1c4] sm:$0xf]
    %v204 = vld [vmem:[#allocation5 + $0x1c8] sm:$0xf]
    %v205 = vld [vmem:[#allocation5 + $0x1cc] sm:$0xf]
    %v206 = vld [vmem:[#allocation5 + $0x1d0] sm:$0xf]
    %v207 = vld [vmem:[#allocation5 + $0x1d4] sm:$0xf]
    %v208 = vld [vmem:[#allocation5 + $0x1d8] sm:$0xf]
    %v209 = vld [vmem:[#allocation5 + $0x1dc] sm:$0xf]
    %v210 = vld [vmem:[#allocation5 + $0x1e0] sm:$0xf]
    %v211 = vld [vmem:[#allocation5 + $0x1e4] sm:$0xf]
    %v212 = vld [vmem:[#allocation5 + $0x1e8] sm:$0xf]
    %v213 = vld [vmem:[#allocation5 + $0x1ec] sm:$0xf]
    %v214 = vld [vmem:[#allocation5 + $0x1f0] sm:$0xf]
    %v215 = vld [vmem:[#allocation5 + $0x1f4] sm:$0xf]
    %v216 = vld [vmem:[#allocation5 + $0x1f8] sm:$0xf]
    %v217 = vld [vmem:[#allocation5 + $0x1fc] sm:$0xf]
    %v218 = vld [vmem:[#allocation10] sm:$0xff]
    %v223 = vunpack.c.l.b16 %v86
    %v224 = vunpack.c.h.b16 %v86
    %v225 = vunpack.c.l.b16 %v87
    %v226 = vunpack.c.h.b16 %v87
    %v227 = vunpack.c.l.b16 %v88
    %v228 = vunpack.c.h.b16 %v88
    %v229 = vunpack.c.l.b16 %v89
    %v230 = vunpack.c.h.b16 %v89
    %v231 = vpack.c.b16 %v223, %v223
    %v232 = vpack.c.b16 %v224, %v224
    %v233 = vpack.c.b16 %v225, %v225
    %v234 = vpack.c.b16 %v226, %v226
    %v235 = vpack.c.b16 %v227, %v227
    %v236 = vpack.c.b16 %v228, %v228
    %v237 = vpack.c.b16 %v229, %v229
    %v238 = vpack.c.b16 %v230, %v230
    %v375 = vunpack.c.l.b16 %v90
    %v376 = vunpack.c.l.b16 %v91
    %v377 = vunpack.c.l.b16 %v92
    %v378 = vunpack.c.l.b16 %v93
    %v379 = vunpack.c.l.b16 %v94
    %v380 = vunpack.c.l.b16 %v95
    %v381 = vunpack.c.l.b16 %v96
    %v382 = vunpack.c.l.b16 %v97
    %v383 = vunpack.c.l.b16 %v98
    %v384 = vunpack.c.l.b16 %v99
    %v385 = vunpack.c.l.b16 %v100
    %v386 = vunpack.c.l.b16 %v101
    %v387 = vunpack.c.l.b16 %v102
    %v388 = vunpack.c.l.b16 %v103
    %v389 = vunpack.c.l.b16 %v104
    %v390 = vunpack.c.l.b16 %v105
    %v391 = vunpack.c.l.b16 %v106
    %v392 = vunpack.c.l.b16 %v107
    %v393 = vunpack.c.l.b16 %v108
    %v394 = vunpack.c.l.b16 %v109
    %v395 = vunpack.c.l.b16 %v110
    %v396 = vunpack.c.l.b16 %v111
    %v397 = vunpack.c.l.b16 %v112
    %v398 = vunpack.c.l.b16 %v113
    %v399 = vunpack.c.l.b16 %v114
    %v400 = vunpack.c.l.b16 %v115
    %v401 = vunpack.c.l.b16 %v116
    %v402 = vunpack.c.l.b16 %v117
    %v403 = vunpack.c.l.b16 %v118
    %v404 = vunpack.c.l.b16 %v119
    %v405 = vunpack.c.l.b16 %v120
    %v406 = vunpack.c.l.b16 %v121
    %v407 = vunpack.c.l.b16 %v122
    %v408 = vunpack.c.l.b16 %v123
    %v409 = vunpack.c.l.b16 %v124
    %v410 = vunpack.c.l.b16 %v125
    %v411 = vunpack.c.l.b16 %v126
    %v412 = vunpack.c.l.b16 %v127
    %v413 = vunpack.c.l.b16 %v128
    %v414 = vunpack.c.l.b16 %v129
    %v415 = vunpack.c.l.b16 %v130
    %v416 = vunpack.c.l.b16 %v131
    %v417 = vunpack.c.l.b16 %v132
    %v418 = vunpack.c.l.b16 %v133
    %v419 = vunpack.c.l.b16 %v134
    %v420 = vunpack.c.l.b16 %v135
    %v421 = vunpack.c.l.b16 %v136
    %v422 = vunpack.c.l.b16 %v137
    %v423 = vunpack.c.l.b16 %v138
    %v424 = vunpack.c.l.b16 %v139
    %v425 = vunpack.c.l.b16 %v140
    %v426 = vunpack.c.l.b16 %v141
    %v427 = vunpack.c.l.b16 %v142
    %v428 = vunpack.c.l.b16 %v143
    %v429 = vunpack.c.l.b16 %v144
    %v430 = vunpack.c.l.b16 %v145
    %v431 = vunpack.c.l.b16 %v146
    %v432 = vunpack.c.l.b16 %v147
    %v433 = vunpack.c.l.b16 %v148
    %v434 = vunpack.c.l.b16 %v149
    %v435 = vunpack.c.l.b16 %v150
    %v436 = vunpack.c.l.b16 %v151
    %v437 = vunpack.c.l.b16 %v152
    %v438 = vunpack.c.l.b16 %v153
    %v439 = vunpack.c.l.b16 %v154
    %v440 = vunpack.c.l.b16 %v155
    %v441 = vunpack.c.l.b16 %v156
    %v442 = vunpack.c.l.b16 %v157
    %v443 = vunpack.c.l.b16 %v158
    %v444 = vunpack.c.l.b16 %v159
    %v445 = vunpack.c.l.b16 %v160
    %v446 = vunpack.c.l.b16 %v161
    %v447 = vunpack.c.l.b16 %v162
    %v448 = vunpack.c.l.b16 %v163
    %v449 = vunpack.c.l.b16 %v164
    %v450 = vunpack.c.l.b16 %v165
    %v451 = vunpack.c.l.b16 %v166
    %v452 = vunpack.c.l.b16 %v167
    %v453 = vunpack.c.l.b16 %v168
    %v454 = vunpack.c.l.b16 %v169
    %v455 = vunpack.c.l.b16 %v170
    %v456 = vunpack.c.l.b16 %v171
    %v457 = vunpack.c.l.b16 %v172
    %v458 = vunpack.c.l.b16 %v173
    %v459 = vunpack.c.l.b16 %v174
    %v460 = vunpack.c.l.b16 %v175
    %v461 = vunpack.c.l.b16 %v176
    %v462 = vunpack.c.l.b16 %v177
    %v463 = vunpack.c.l.b16 %v178
    %v464 = vunpack.c.l.b16 %v179
    %v465 = vunpack.c.l.b16 %v180
    %v466 = vunpack.c.l.b16 %v181
    %v467 = vunpack.c.l.b16 %v182
    %v468 = vunpack.c.l.b16 %v183
    %v469 = vunpack.c.l.b16 %v184
    %v470 = vunpack.c.l.b16 %v185
    %v471 = vunpack.c.l.b16 %v186
    %v472 = vunpack.c.l.b16 %v187
    %v473 = vunpack.c.l.b16 %v188
    %v474 = vunpack.c.l.b16 %v189
    %v475 = vunpack.c.l.b16 %v190
    %v476 = vunpack.c.l.b16 %v191
    %v477 = vunpack.c.l.b16 %v192
    %v478 = vunpack.c.l.b16 %v193
    %v479 = vunpack.c.l.b16 %v194
    %v480 = vunpack.c.l.b16 %v195
    %v481 = vunpack.c.l.b16 %v196
    %v482 = vunpack.c.l.b16 %v197
    %v483 = vunpack.c.l.b16 %v198
    %v484 = vunpack.c.l.b16 %v199
    %v485 = vunpack.c.l.b16 %v200
    %v486 = vunpack.c.l.b16 %v201
    %v487 = vunpack.c.l.b16 %v202
    %v488 = vunpack.c.l.b16 %v203
    %v489 = vunpack.c.l.b16 %v204
    %v490 = vunpack.c.l.b16 %v205
    %v491 = vunpack.c.l.b16 %v206
    %v492 = vunpack.c.l.b16 %v207
    %v493 = vunpack.c.l.b16 %v208
    %v494 = vunpack.c.l.b16 %v209
    %v495 = vunpack.c.l.b16 %v210
    %v496 = vunpack.c.l.b16 %v211
    %v497 = vunpack.c.l.b16 %v212
    %v498 = vunpack.c.l.b16 %v213
    %v499 = vunpack.c.l.b16 %v214
    %v500 = vunpack.c.l.b16 %v215
    %v501 = vunpack.c.l.b16 %v216
    %v502 = vunpack.c.l.b16 %v217
    %v503 = vpack.c.b16 %v376, %v375
    %v504 = vpack.c.b16 %v378, %v377
    %v505 = vpack.c.b16 %v380, %v379
    %v506 = vpack.c.b16 %v382, %v381
    %v507 = vpack.c.b16 %v384, %v383
    %v508 = vpack.c.b16 %v386, %v385
    %v509 = vpack.c.b16 %v388, %v387
    %v510 = vpack.c.b16 %v390, %v389
    %v511 = vpack.c.b16 %v392, %v391
    %v512 = vpack.c.b16 %v394, %v393
    %v513 = vpack.c.b16 %v396, %v395
    %v514 = vpack.c.b16 %v398, %v397
    %v515 = vpack.c.b16 %v400, %v399
    %v516 = vpack.c.b16 %v402, %v401
    %v517 = vpack.c.b16 %v404, %v403
    %v518 = vpack.c.b16 %v406, %v405
    %v519 = vpack.c.b16 %v408, %v407
    %v520 = vpack.c.b16 %v410, %v409
    %v521 = vpack.c.b16 %v412, %v411
    %v522 = vpack.c.b16 %v414, %v413
    %v523 = vpack.c.b16 %v416, %v415
    %v524 = vpack.c.b16 %v418, %v417
    %v525 = vpack.c.b16 %v420, %v419
    %v526 = vpack.c.b16 %v422, %v421
    %v527 = vpack.c.b16 %v424, %v423
    %v528 = vpack.c.b16 %v426, %v425
    %v529 = vpack.c.b16 %v428, %v427
    %v530 = vpack.c.b16 %v430, %v429
    %v531 = vpack.c.b16 %v432, %v431
    %v532 = vpack.c.b16 %v434, %v433
    %v533 = vpack.c.b16 %v436, %v435
    %v534 = vpack.c.b16 %v438, %v437
    %v535 = vpack.c.b16 %v440, %v439
    %v536 = vpack.c.b16 %v442, %v441
    %v537 = vpack.c.b16 %v444, %v443
    %v538 = vpack.c.b16 %v446, %v445
    %v539 = vpack.c.b16 %v448, %v447
    %v540 = vpack.c.b16 %v450, %v449
    %v541 = vpack.c.b16 %v452, %v451
    %v542 = vpack.c.b16 %v454, %v453
    %v543 = vpack.c.b16 %v456, %v455
    %v544 = vpack.c.b16 %v458, %v457
    %v545 = vpack.c.b16 %v460, %v459
    %v546 = vpack.c.b16 %v462, %v461
    %v547 = vpack.c.b16 %v464, %v463
    %v548 = vpack.c.b16 %v466, %v465
    %v549 = vpack.c.b16 %v468, %v467
    %v550 = vpack.c.b16 %v470, %v469
    %v551 = vpack.c.b16 %v472, %v471
    %v552 = vpack.c.b16 %v474, %v473
    %v553 = vpack.c.b16 %v476, %v475
    %v554 = vpack.c.b16 %v478, %v477
    %v555 = vpack.c.b16 %v480, %v479
    %v556 = vpack.c.b16 %v482, %v481
    %v557 = vpack.c.b16 %v484, %v483
    %v558 = vpack.c.b16 %v486, %v485
    %v559 = vpack.c.b16 %v488, %v487
    %v560 = vpack.c.b16 %v490, %v489
    %v561 = vpack.c.b16 %v492, %v491
    %v562 = vpack.c.b16 %v494, %v493
    %v563 = vpack.c.b16 %v496, %v495
    %v564 = vpack.c.b16 %v498, %v497
    %v565 = vpack.c.b16 %v500, %v499
    %v566 = vpack.c.b16 %v502, %v501
    %631 = vmatprep.subr.bf16.mxu0 0
    %632 = vmatpush1.bf16.msra.mxu0 %v510
    %633 = vmatprep.subr.bf16.mxu0 0
    %634 = vmatpush1.bf16.msra.mxu0 %v509
    %635 = vmatprep.subr.bf16.mxu0 0
    %636 = vmatpush1.bf16.msra.mxu0 %v508
    %637 = vmatprep.subr.bf16.mxu0 0
    %638 = vmatpush1.bf16.msra.mxu0 %v507
    %639 = vmatprep.subr.bf16.mxu0 0
    %640 = vmatpush1.bf16.msra.mxu0 %v506
    %641 = vmatprep.subr.bf16.mxu0 0
    %642 = vmatpush1.bf16.msra.mxu0 %v505
    %643 = vmatprep.subr.bf16.mxu0 0
    %644 = vmatpush1.bf16.msra.mxu0 %v504
    %645 = vmatprep.subr.bf16.mxu0 0
    %646 = vmatpush1.bf16.msra.mxu0 %v503
    %647 = vmatprep.subr.bf16.mxu0 0
    %648 = vmatpush2.bf16.msra.mxu0 %v518
    %649 = vmatprep.subr.bf16.mxu0 0
    %650 = vmatpush2.bf16.msra.mxu0 %v517
    %651 = vmatprep.subr.bf16.mxu0 0
    %652 = vmatpush2.bf16.msra.mxu0 %v516
    %653 = vmatprep.subr.bf16.mxu0 0
    %654 = vmatpush2.bf16.msra.mxu0 %v515
    %655 = vmatprep.subr.bf16.mxu0 0
    %656 = vmatpush2.bf16.msra.mxu0 %v514
    %657 = vmatprep.subr.bf16.mxu0 0
    %658 = vmatpush2.bf16.msra.mxu0 %v513
    %659 = vmatprep.subr.bf16.mxu0 0
    %660 = vmatpush2.bf16.msra.mxu0 %v512
    %661 = vmatprep.subr.bf16.mxu0 0
    %662 = vmatpush2.bf16.msra.mxu0 %v511
    %663 = vmatprep.mubr.bf16.mxu0 %v232
    %664 = vmatmul.mubr.bf16.gmra.mxu0 %v231
    %v665 = vpop.f32.mrf.mxu0
    %v666 = vadd.f32 %v218, %v665
    %v667 = vpop.f32.mrf.mxu0
    %v668 = vpop.f32.mrf.mxu0
    %v669 = vpop.f32.mrf.mxu0
    %670 = vdwg.mxu0
    %671 = vmatprep.subr.bf16.mxu0 0
    %672 = vmatpush1.bf16.msra.mxu0 %v526
    %673 = vmatprep.subr.bf16.mxu0 0
    %674 = vmatpush1.bf16.msra.mxu0 %v525
    %675 = vmatprep.subr.bf16.mxu0 0
    %676 = vmatpush1.bf16.msra.mxu0 %v524
    %677 = vmatprep.subr.bf16.mxu0 0
    %678 = vmatpush1.bf16.msra.mxu0 %v523
    %679 = vmatprep.subr.bf16.mxu0 0
    %680 = vmatpush1.bf16.msra.mxu0 %v522
    %681 = vmatprep.subr.bf16.mxu0 0
    %682 = vmatpush1.bf16.msra.mxu0 %v521
    %683 = vmatprep.subr.bf16.mxu0 0
    %684 = vmatpush1.bf16.msra.mxu0 %v520
    %685 = vmatprep.subr.bf16.mxu0 0
    %686 = vmatpush1.bf16.msra.mxu0 %v519
    %687 = vmatprep.subr.bf16.mxu0 0
    %688 = vmatpush2.bf16.msra.mxu0 %v534
    %689 = vmatprep.subr.bf16.mxu0 0
    %690 = vmatpush2.bf16.msra.mxu0 %v533
    %691 = vmatprep.subr.bf16.mxu0 0
    %692 = vmatpush2.bf16.msra.mxu0 %v532
    %693 = vmatprep.subr.bf16.mxu0 0
    %694 = vmatpush2.bf16.msra.mxu0 %v531
    %695 = vmatprep.subr.bf16.mxu0 0
    %696 = vmatpush2.bf16.msra.mxu0 %v530
    %697 = vmatprep.subr.bf16.mxu0 0
    %698 = vmatpush2.bf16.msra.mxu0 %v529
    %699 = vmatprep.subr.bf16.mxu0 0
    %700 = vmatpush2.bf16.msra.mxu0 %v528
    %701 = vmatprep.subr.bf16.mxu0 0
    %702 = vmatpush2.bf16.msra.mxu0 %v527
    %703 = vmatprep.mubr.bf16.mxu0 %v234
    %704 = vmatmul.mubr.bf16.gmra.mxu0 %v233
    %v705 = vpop.f32.mrf.mxu0
    %v706 = vadd.f32 %v666, %v705
    %v707 = vpop.f32.mrf.mxu0
    %v708 = vpop.f32.mrf.mxu0
    %v709 = vpop.f32.mrf.mxu0
    %710 = vdwg.mxu0
    %711 = vmatprep.subr.bf16.mxu0 0
    %712 = vmatpush1.bf16.msra.mxu0 %v542
    %713 = vmatprep.subr.bf16.mxu0 0
    %714 = vmatpush1.bf16.msra.mxu0 %v541
    %715 = vmatprep.subr.bf16.mxu0 0
    %716 = vmatpush1.bf16.msra.mxu0 %v540
    %717 = vmatprep.subr.bf16.mxu0 0
    %718 = vmatpush1.bf16.msra.mxu0 %v539
    %719 = vmatprep.subr.bf16.mxu0 0
    %720 = vmatpush1.bf16.msra.mxu0 %v538
    %721 = vmatprep.subr.bf16.mxu0 0
    %722 = vmatpush1.bf16.msra.mxu0 %v537
    %723 = vmatprep.subr.bf16.mxu0 0
    %724 = vmatpush1.bf16.msra.mxu0 %v536
    %725 = vmatprep.subr.bf16.mxu0 0
    %726 = vmatpush1.bf16.msra.mxu0 %v535
    %727 = vmatprep.subr.bf16.mxu0 0
    %728 = vmatpush2.bf16.msra.mxu0 %v550
    %729 = vmatprep.subr.bf16.mxu0 0
    %730 = vmatpush2.bf16.msra.mxu0 %v549
    %731 = vmatprep.subr.bf16.mxu0 0
    %732 = vmatpush2.bf16.msra.mxu0 %v548
    %733 = vmatprep.subr.bf16.mxu0 0
    %734 = vmatpush2.bf16.msra.mxu0 %v547
    %735 = vmatprep.subr.bf16.mxu0 0
    %736 = vmatpush2.bf16.msra.mxu0 %v546
    %737 = vmatprep.subr.bf16.mxu0 0
    %738 = vmatpush2.bf16.msra.mxu0 %v545
    %739 = vmatprep.subr.bf16.mxu0 0
    %740 = vmatpush2.bf16.msra.mxu0 %v544
    %741 = vmatprep.subr.bf16.mxu0 0
    %742 = vmatpush2.bf16.msra.mxu0 %v543
    %743 = vmatprep.mubr.bf16.mxu0 %v236
    %744 = vmatmul.mubr.bf16.gmra.mxu0 %v235
    %v745 = vpop.f32.mrf.mxu0
    %v746 = vadd.f32 %v706, %v745
    %v747 = vpop.f32.mrf.mxu0
    %v748 = vpop.f32.mrf.mxu0
    %v749 = vpop.f32.mrf.mxu0
    %750 = vdwg.mxu0
    %751 = vmatprep.subr.bf16.mxu0 0
    %752 = vmatpush1.bf16.msra.mxu0 %v558
    %753 = vmatprep.subr.bf16.mxu0 0
    %754 = vmatpush1.bf16.msra.mxu0 %v557
    %755 = vmatprep.subr.bf16.mxu0 0
    %756 = vmatpush1.bf16.msra.mxu0 %v556
    %757 = vmatprep.subr.bf16.mxu0 0
    %758 = vmatpush1.bf16.msra.mxu0 %v555
    %759 = vmatprep.subr.bf16.mxu0 0
    %760 = vmatpush1.bf16.msra.mxu0 %v554
    %761 = vmatprep.subr.bf16.mxu0 0
    %762 = vmatpush1.bf16.msra.mxu0 %v553
    %763 = vmatprep.subr.bf16.mxu0 0
    %764 = vmatpush1.bf16.msra.mxu0 %v552
    %765 = vmatprep.subr.bf16.mxu0 0
    %766 = vmatpush1.bf16.msra.mxu0 %v551
    %767 = vmatprep.subr.bf16.mxu0 0
    %768 = vmatpush2.bf16.msra.mxu0 %v566
    %769 = vmatprep.subr.bf16.mxu0 0
    %770 = vmatpush2.bf16.msra.mxu0 %v565
    %771 = vmatprep.subr.bf16.mxu0 0
    %772 = vmatpush2.bf16.msra.mxu0 %v564
    %773 = vmatprep.subr.bf16.mxu0 0
    %774 = vmatpush2.bf16.msra.mxu0 %v563
    %775 = vmatprep.subr.bf16.mxu0 0
    %776 = vmatpush2.bf16.msra.mxu0 %v562
    %777 = vmatprep.subr.bf16.mxu0 0
    %778 = vmatpush2.bf16.msra.mxu0 %v561
    %779 = vmatprep.subr.bf16.mxu0 0
    %780 = vmatpush2.bf16.msra.mxu0 %v560
    %781 = vmatprep.subr.bf16.mxu0 0
    %782 = vmatpush2.bf16.msra.mxu0 %v559
    %783 = vmatprep.mubr.bf16.mxu0 %v238
    %784 = vmatmul.mubr.bf16.gmra.mxu0 %v237
    %v785 = vpop.f32.mrf.mxu0
    %v786 = vadd.f32 %v746, %v785
    %v787 = vpop.f32.mrf.mxu0
    %v788 = vpop.f32.mrf.mxu0
    %v789 = vpop.f32.mrf.mxu0
    %790 = vdwg.mxu0
    %v791 = vmax.f32 %v786, 0.0
    %v792 = vpack.c.bf16 %v791, %v791
    %v793 = vld [vmem:[#allocation7] sm:$0xf]
    %v794 = vld [vmem:[#allocation7 + $0x4] sm:$0xf]
    %v795 = vld [vmem:[#allocation7 + $0x8] sm:$0xf]
    %v796 = vld [vmem:[#allocation7 + $0xc] sm:$0xf]
    %v797 = vld [vmem:[#allocation7 + $0x10] sm:$0xf]
    %v798 = vld [vmem:[#allocation7 + $0x14] sm:$0xf]
    %v799 = vld [vmem:[#allocation7 + $0x18] sm:$0xf]
    %v800 = vld [vmem:[#allocation7 + $0x1c] sm:$0xf]
    %v801 = vld [vmem:[#allocation7 + $0x20] sm:$0xf]
    %v802 = vld [vmem:[#allocation7 + $0x24] sm:$0xf]
    %v803 = vld [vmem:[#allocation7 + $0x28] sm:$0xf]
    %v804 = vld [vmem:[#allocation7 + $0x2c] sm:$0xf]
    %v805 = vld [vmem:[#allocation7 + $0x30] sm:$0xf]
    %v806 = vld [vmem:[#allocation7 + $0x34] sm:$0xf]
    %v807 = vld [vmem:[#allocation7 + $0x38] sm:$0xf]
    %v808 = vld [vmem:[#allocation7 + $0x3c] sm:$0xf]
    %v809 = vld [vmem:[#allocation10 + $0x8] sm:$0xff]
    %v826 = vunpack.c.l.b16 %v793
    %v827 = vunpack.c.l.b16 %v794
    %v828 = vunpack.c.l.b16 %v795
    %v829 = vunpack.c.l.b16 %v796
    %v830 = vunpack.c.l.b16 %v797
    %v831 = vunpack.c.l.b16 %v798
    %v832 = vunpack.c.l.b16 %v799
    %v833 = vunpack.c.l.b16 %v800
    %v834 = vunpack.c.l.b16 %v801
    %v835 = vunpack.c.l.b16 %v802
    %v836 = vunpack.c.l.b16 %v803
    %v837 = vunpack.c.l.b16 %v804
    %v838 = vunpack.c.l.b16 %v805
    %v839 = vunpack.c.l.b16 %v806
    %v840 = vunpack.c.l.b16 %v807
    %v841 = vunpack.c.l.b16 %v808
    %v842 = vpack.c.b16 %v827, %v826
    %v843 = vpack.c.b16 %v829, %v828
    %v844 = vpack.c.b16 %v831, %v830
    %v845 = vpack.c.b16 %v833, %v832
    %v846 = vpack.c.b16 %v835, %v834
    %v847 = vpack.c.b16 %v837, %v836
    %v848 = vpack.c.b16 %v839, %v838
    %v849 = vpack.c.b16 %v841, %v840
    %858 = vmatprep.subr.bf16.mxu0 0
    %859 = vmatpush1.bf16.msra.mxu0 %v849
    %860 = vmatprep.subr.bf16.mxu0 0
    %861 = vmatpush1.bf16.msra.mxu0 %v848
    %862 = vmatprep.subr.bf16.mxu0 0
    %863 = vmatpush1.bf16.msra.mxu0 %v847
    %864 = vmatprep.subr.bf16.mxu0 0
    %865 = vmatpush1.bf16.msra.mxu0 %v846
    %866 = vmatprep.subr.bf16.mxu0 0
    %867 = vmatpush1.bf16.msra.mxu0 %v845
    %868 = vmatprep.subr.bf16.mxu0 0
    %869 = vmatpush1.bf16.msra.mxu0 %v844
    %870 = vmatprep.subr.bf16.mxu0 0
    %871 = vmatpush1.bf16.msra.mxu0 %v843
    %872 = vmatprep.subr.bf16.mxu0 0
    %873 = vmatpush1.bf16.msra.mxu0 %v842
    %874 = vmatprep.subr.bf16.mxu0 0
    %875 = vmatpush2.bf16.msra.mxu0 0
    %876 = vmatprep.subr.bf16.mxu0 0
    %877 = vmatpush2.bf16.msra.mxu0 0
    %878 = vmatprep.subr.bf16.mxu0 0
    %879 = vmatpush2.bf16.msra.mxu0 0
    %880 = vmatprep.subr.bf16.mxu0 0
    %881 = vmatpush2.bf16.msra.mxu0 0
    %882 = vmatprep.subr.bf16.mxu0 0
    %883 = vmatpush2.bf16.msra.mxu0 0
    %884 = vmatprep.subr.bf16.mxu0 0
    %885 = vmatpush2.bf16.msra.mxu0 0
    %886 = vmatprep.subr.bf16.mxu0 0
    %887 = vmatpush2.bf16.msra.mxu0 0
    %888 = vmatprep.subr.bf16.mxu0 0
    %889 = vmatpush2.bf16.msra.mxu0 0
    %890 = vmatprep.mubr.bf16.mxu0 0
    %891 = vmatmul.mubr.bf16.gmra.mxu0 %v792
    %v892 = vpop.f32.mrf.mxu0
    %v893 = vadd.f32 %v809, %v892
    %v894 = vpop.f32.mrf.mxu0
    %v895 = vpop.f32.mrf.mxu0
    %v896 = vpop.f32.mrf.mxu0
    %897 = vdwg.mxu0
    %v898 = vmax.f32 %v893, 0.0
    %v899 = vpack.c.bf16 %v898, %v898
    %v900 = vld [vmem:[#allocation8] sm:$0xf]
    %v901 = vld [vmem:[#allocation8 + $0x4] sm:$0xf]
    %v902 = vld [vmem:[#allocation8 + $0x8] sm:$0xf]
    %v903 = vld [vmem:[#allocation8 + $0xc] sm:$0xf]
    %v904 = vld [vmem:[#allocation8 + $0x10] sm:$0xf]
    %v905 = vld [vmem:[#allocation8 + $0x14] sm:$0xf]
    %v906 = vld [vmem:[#allocation8 + $0x18] sm:$0xf]
    %v907 = vld [vmem:[#allocation8 + $0x1c] sm:$0xf]
    %v908 = vld [vmem:[#allocation8 + $0x20] sm:$0xf]
    %v909 = vld [vmem:[#allocation8 + $0x24] sm:$0xf]
    %v910 = vld [vmem:[#allocation8 + $0x28] sm:$0xf]
    %v911 = vld [vmem:[#allocation8 + $0x2c] sm:$0xf]
    %v912 = vld [vmem:[#allocation8 + $0x30] sm:$0xf]
    %v913 = vld [vmem:[#allocation8 + $0x34] sm:$0xf]
    %v914 = vld [vmem:[#allocation8 + $0x38] sm:$0xf]
    %v915 = vld [vmem:[#allocation8 + $0x3c] sm:$0xf]
    %v916 = vld [vmem:[#allocation10 + $0x10] sm:$0xff]
    %v933 = vunpack.c.l.b16 %v900
    %v934 = vunpack.c.l.b16 %v901
    %v935 = vunpack.c.l.b16 %v902
    %v936 = vunpack.c.l.b16 %v903
    %v937 = vunpack.c.l.b16 %v904
    %v938 = vunpack.c.l.b16 %v905
    %v939 = vunpack.c.l.b16 %v906
    %v940 = vunpack.c.l.b16 %v907
    %v941 = vunpack.c.l.b16 %v908
    %v942 = vunpack.c.l.b16 %v909
    %v943 = vunpack.c.l.b16 %v910
    %v944 = vunpack.c.l.b16 %v911
    %v945 = vunpack.c.l.b16 %v912
    %v946 = vunpack.c.l.b16 %v913
    %v947 = vunpack.c.l.b16 %v914
    %v948 = vunpack.c.l.b16 %v915
    %v949 = vpack.c.b16 %v934, %v933
    %v950 = vpack.c.b16 %v936, %v935
    %v951 = vpack.c.b16 %v938, %v937
    %v952 = vpack.c.b16 %v940, %v939
    %v953 = vpack.c.b16 %v942, %v941
    %v954 = vpack.c.b16 %v944, %v943
    %v955 = vpack.c.b16 %v946, %v945
    %v956 = vpack.c.b16 %v948, %v947
    %965 = vmatprep.subr.bf16.mxu0 0
    %966 = vmatpush1.bf16.msra.mxu0 %v956
    %967 = vmatprep.subr.bf16.mxu0 0
    %968 = vmatpush1.bf16.msra.mxu0 %v955
    %969 = vmatprep.subr.bf16.mxu0 0
    %970 = vmatpush1.bf16.msra.mxu0 %v954
    %971 = vmatprep.subr.bf16.mxu0 0
    %972 = vmatpush1.bf16.msra.mxu0 %v953
    %973 = vmatprep.subr.bf16.mxu0 0
    %974 = vmatpush1.bf16.msra.mxu0 %v952
    %975 = vmatprep.subr.bf16.mxu0 0
    %976 = vmatpush1.bf16.msra.mxu0 %v951
    %977 = vmatprep.subr.bf16.mxu0 0
    %978 = vmatpush1.bf16.msra.mxu0 %v950
    %979 = vmatprep.subr.bf16.mxu0 0
    %980 = vmatpush1.bf16.msra.mxu0 %v949
    %981 = vmatprep.subr.bf16.mxu0 0
    %982 = vmatpush2.bf16.msra.mxu0 0
    %983 = vmatprep.subr.bf16.mxu0 0
    %984 = vmatpush2.bf16.msra.mxu0 0
    %985 = vmatprep.subr.bf16.mxu0 0
    %986 = vmatpush2.bf16.msra.mxu0 0
    %987 = vmatprep.subr.bf16.mxu0 0
    %988 = vmatpush2.bf16.msra.mxu0 0
    %989 = vmatprep.subr.bf16.mxu0 0
    %990 = vmatpush2.bf16.msra.mxu0 0
    %991 = vmatprep.subr.bf16.mxu0 0
    %992 = vmatpush2.bf16.msra.mxu0 0
    %993 = vmatprep.subr.bf16.mxu0 0
    %994 = vmatpush2.bf16.msra.mxu0 0
    %995 = vmatprep.subr.bf16.mxu0 0
    %996 = vmatpush2.bf16.msra.mxu0 0
    %997 = vmatprep.mubr.bf16.mxu0 0
    %998 = vmatmul.mubr.bf16.gmra.mxu0 %v899
    %v999 = vpop.f32.mrf.mxu0
    %v1000 = vadd.f32 %v916, %v999
    %v1001 = vpop.f32.mrf.mxu0
    %v1002 = vpop.f32.mrf.mxu0
    %v1003 = vpop.f32.mrf.mxu0
    %1004 = vdwg.mxu0
    %1005 = vst [vmem:[#allocation11] sm:$0xff] %v1000
    // Predicated region
    $region42: #{tpu_custom_call.1} parent=1 // pred_check
      _
    $region43: #{tpu_custom_call.1} parent=1 // pred_check_branch
      %1007 = sbr.rel (0) target = $region45
    $region44: #{tpu_custom_call.1} parent=1 // pred_region
      %s1009 = ssub.s32 128, 128
      %1010 = vsyncadd [#allocation4], %s1009
      %s1012 = sshll.u32 [#allocation11], 4
      %s1013 = int_to_ptr.vmem [resolvable:$true] %s1012
      %1015 = dma.vmem_to_hbm [thread:$0]  %s1013, 128, %s5, [#allocation4]
    $region45: #{tpu_custom_call.1} parent=1 // pred_fallthru
      _
    // Predicated region
    $region46: #{tpu_custom_call.1} parent=1 // pred_check
      _
    $region47: #{tpu_custom_call.1} parent=1 // pred_check_branch
      %1017 = sbr.rel (0) target = $region49
    $region48: #{tpu_custom_call.1} parent=1 // pred_region
      %1018 = dma.done [#allocation4], 128
    $region49: #{tpu_custom_call.1} parent=1 // pred_fallthru
      _
    %1019 = vsyncpa [#allocation3], 1
    %1020 = vsyncpa [#allocation6], 1
    %1021 = vsyncpa [#allocation9], 1
    %1022 = vsyncpa [#allocation4], 1

</llo_original>
